<compile_context>
chip_gen: v5e
topology: v5e:2x2
jax: 0.10.0
libtpu: 0.0.40
codegen_flags: <defaults>
</compile_context>

<pallas_src>
import jax
import jax.numpy as jnp
from jax.experimental import pallas as pl
from jax.experimental.pallas import tpu as pltpu


# --------------------------------------------------------------------------
# Kernel 1: parallel input projection  gx[t] = x[t] @ W_ih^T + (b_ih + b_hh)
# --------------------------------------------------------------------------
def _input_proj_kernel(x_ref, wih_ref, b_ref, gx_ref):
    x_t = x_ref[0].astype(jnp.float32)                      # (B, I)
    gx_ref[0] = (
        jnp.dot(x_t, wih_ref[...].astype(jnp.float32),
                preferred_element_type=jnp.float32)
        + b_ref[...].astype(jnp.float32)
    )                                                        # (B, 4H) f32


# --------------------------------------------------------------------------
# Kernel 2: sequential recurrence over time
# --------------------------------------------------------------------------
def _recurrent_kernel(gx_ref, whh_ref,                 # inputs
                      y_ref, hn_ref, cn_ref,           # outputs
                      h_sc, c_sc):                     # scratch (persists)
    t = pl.program_id(0)
    T = pl.num_programs(0)

    # Zero initial hidden / cell state (PyTorch default when h_0/c_0 omitted).
    @pl.when(t == 0)
    def _():
        h_sc[...] = jnp.zeros_like(h_sc)
        c_sc[...] = jnp.zeros_like(c_sc)

    h_prev = h_sc[...]                                 # (B, H) f32
    c_prev = c_sc[...]                                 # (B, H) f32

    # Only the recurrent matmul remains on the serial path.
    gates = gx_ref[0] + jnp.dot(
        h_prev, whh_ref[...].astype(jnp.float32),
        preferred_element_type=jnp.float32)            # (B, 4H) f32

    H = h_sc.shape[-1]
    i_g = jax.nn.sigmoid(gates[:, 0 * H:1 * H])
    f_g = jax.nn.sigmoid(gates[:, 1 * H:2 * H])
    g_g = jnp.tanh(gates[:, 2 * H:3 * H])
    o_g = jax.nn.sigmoid(gates[:, 3 * H:4 * H])

    c_t = f_g * c_prev + i_g * g_g
    h_t = o_g * jnp.tanh(c_t)

    h_sc[...] = h_t
    c_sc[...] = c_t

    y_ref[0] = h_t.astype(y_ref.dtype)

    # Final states: write once, on the last step only.
    @pl.when(t == T - 1)
    def _():
        hn_ref[...] = h_t.astype(hn_ref.dtype)
        cn_ref[...] = c_t.astype(cn_ref.dtype)


def lstm_forward(x, w_ih, w_hh, b_ih, b_hh):
    """Single-layer unidirectional LSTM forward (batch_first=False).

    x:    (T, B, I)
    w_ih: (4H, I)   w_hh: (4H, H)   b_ih, b_hh: (4H,)   (PyTorch layout, gate order i,f,g,o)
    Returns (output (T,B,H), (h_n (1,B,H), c_n (1,B,H))).
    """
    T, B, I = x.shape
    H4 = w_ih.shape[0]
    H = H4 // 4

    wih_t = jnp.transpose(w_ih)                 # (I, 4H) -> lane-dense matmul output
    whh_t = jnp.transpose(w_hh)                 # (H, 4H)
    bias = (b_ih + b_hh).reshape(1, H4)         # combined bias row

    # ---- Pass 1: parallel input projections for all time steps -------------
    gx = pl.pallas_call(
        _input_proj_kernel,
        out_shape=jax.ShapeDtypeStruct((T, B, H4), jnp.float32),
        grid_spec=pltpu.PrefetchScalarGridSpec(
            num_scalar_prefetch=0,
            grid=(T,),
            in_specs=[
                pl.BlockSpec((1, B, I), lambda t: (t, 0, 0)),   # x_t slice
                pl.BlockSpec((I, H4), lambda t: (0, 0)),        # W_ih^T, VMEM-resident
                pl.BlockSpec((1, H4), lambda t: (0, 0)),        # bias, VMEM-resident
            ],
            out_specs=pl.BlockSpec((1, B, H4), lambda t: (t, 0, 0)),
        ),
        compiler_params=pltpu.CompilerParams(
            dimension_semantics=("parallel",),   # no dependence across t here
        ),
    )(x, wih_t, bias)

    # ---- Pass 2: sequential recurrence --------------------------------------
    out_shapes = (
        jax.ShapeDtypeStruct((T, B, H), x.dtype),   # per-step hidden states
        jax.ShapeDtypeStruct((B, H), x.dtype),      # h_n
        jax.ShapeDtypeStruct((B, H), x.dtype),      # c_n
    )

    y, h_n, c_n = pl.pallas_call(
        _recurrent_kernel,
        out_shape=out_shapes,
        grid_spec=pltpu.PrefetchScalarGridSpec(
            num_scalar_prefetch=0,
            grid=(T,),
            in_specs=[
                pl.BlockSpec((1, B, H4), lambda t: (t, 0, 0)),  # precomputed gate inputs
                pl.BlockSpec((H, H4), lambda t: (0, 0)),        # W_hh^T, VMEM-resident
            ],
            out_specs=[
                pl.BlockSpec((1, B, H), lambda t: (t, 0, 0)),
                pl.BlockSpec((B, H), lambda t: (0, 0)),
                pl.BlockSpec((B, H), lambda t: (0, 0)),
            ],
            scratch_shapes=[
                pltpu.VMEM((B, H), jnp.float32),    # h state
                pltpu.VMEM((B, H), jnp.float32),    # c state
            ],
        ),
        compiler_params=pltpu.CompilerParams(
            # true recurrence -> must stay sequential
            dimension_semantics=("arbitrary",),
        ),
    )(gx, whh_t)

    return y, (h_n.reshape(1, B, H), c_n.reshape(1, B, H))


class TransLayerRule1LSTMPallas:
    """JAX/Pallas equivalent of TransLayer_rule1_LSTM wrapping nn.LSTM(I, H).

    torch.jit.script() is a semantic no-op, so forward() is exactly the LSTM
    forward pass implemented by the Pallas kernels above.
    """

    def __init__(self, w_ih, w_hh, b_ih, b_hh):
        self.w_ih = w_ih
        self.w_hh = w_hh
        self.b_ih = b_ih
        self.b_hh = b_hh

    def __call__(self, x):
        return lstm_forward(x, self.w_ih, self.w_hh, self.b_ih, self.b_hh)


def _lstm_reference(x, w_ih, w_hh, b_ih, b_hh):
    """Pure-JAX reference (same math as torch nn.LSTM, gate order i,f,g,o)."""
    T, B, I = x.shape
    H = w_hh.shape[1]
    hi = jax.lax.Precision.HIGHEST

    def step(carry, x_t):
        h, c = carry
        gates = (jnp.dot(x_t, w_ih.T, precision=hi) + b_ih
                 + jnp.dot(h, w_hh.T, precision=hi) + b_hh)
        i_g, f_g, g_g, o_g = jnp.split(gates, 4, axis=-1)
        i_g = jax.nn.sigmoid(i_g)
        f_g = jax.nn.sigmoid(f_g)
        g_g = jnp.tanh(g_g)
        o_g = jax.nn.sigmoid(o_g)
        c_n = f_g * c + i_g * g_g
        h_n = o_g * jnp.tanh(c_n)
        return (h_n, c_n), h_n

    h0 = jnp.zeros((B, H), jnp.float32)
    c0 = jnp.zeros((B, H), jnp.float32)
    (h_n, c_n), ys = jax.lax.scan(step, (h0, c0), x.astype(jnp.float32))
    return ys.astype(x.dtype), (h_n[None].astype(x.dtype), c_n[None].astype(x.dtype))


if __name__ == "__main__":
    # Shapes consistent with nn.LSTM(input_size=32, hidden_size=32),
    # batch_first=False input: (seq=8, batch=2, input=32).
    T, B, I, H = 8, 2, 32, 32
    key = jax.random.PRNGKey(0)
    kx, k1, k2, k3, k4 = jax.random.split(key, 5)

    x = jax.random.normal(kx, (T, B, I), dtype=jnp.float32)

    # PyTorch-style init: U(-1/sqrt(H), 1/sqrt(H)).
    bound = 1.0 / jnp.sqrt(jnp.float32(H))
    w_ih = jax.random.uniform(k1, (4 * H, I), jnp.float32, -bound, bound)
    w_hh = jax.random.uniform(k2, (4 * H, H), jnp.float32, -bound, bound)
    b_ih = jax.random.uniform(k3, (4 * H,), jnp.float32, -bound, bound)
    b_hh = jax.random.uniform(k4, (4 * H,), jnp.float32, -bound, bound)

    layer = TransLayerRule1LSTMPallas(w_ih, w_hh, b_ih, b_hh)
    y, (h_n, c_n) = layer(x)
    y = jax.block_until_ready(y)
    h_n = jax.block_until_ready(h_n)
    c_n = jax.block_until_ready(c_n)

    # Sanity check against a pure-JAX reference with identical semantics.
    y_ref, (h_ref, c_ref) = _lstm_reference(x, w_ih, w_hh, b_ih, b_hh)
    assert y.shape == (T, B, H) and h_n.shape == (1, B, H) and c_n.shape == (1, B, H)
    assert jnp.allclose(y, y_ref, atol=1e-3, rtol=1e-3)
    assert jnp.allclose(h_n, h_ref, atol=1e-3, rtol=1e-3)
    assert jnp.allclose(c_n, c_ref, atol=1e-3, rtol=1e-3)
    assert jnp.allclose(y[-1], h_n[0], atol=1e-6)

    print("KERNEL_OK")
</pallas_src>

<mosaic_0001>
module attributes {stable_mosaic.version = 11 : i64} {
  func.func @_input_proj_kernel(%arg0: i32, %arg1: memref<1x2x32xf32, #tpu.memory_space<vmem>>, %arg2: memref<32x128xf32, #tpu.memory_space<vmem>>, %arg3: memref<1x128xf32, #tpu.memory_space<vmem>>, %arg4: memref<1x2x128xf32, #tpu.memory_space<vmem>>) attributes {dimension_semantics = [#tpu.dimension_semantics<parallel>], iteration_bounds = array<i64: 8>, scalar_prefetch = 0 : i64, scratch_operands = 0 : i64, tpu.core_type = #tpu.core_type<tc>, window_params = [{transform_indices = @transform_0, window_bounds = array<i64: 1, 2, 32>}, {pipeline_mode = #tpu.pipeline_mode<synchronous>, transform_indices = @transform_1, window_bounds = array<i64: 32, 128>}, {pipeline_mode = #tpu.pipeline_mode<synchronous>, transform_indices = @transform_2, window_bounds = array<i64: 1, 128>}, {transform_indices = @transform_3, window_bounds = array<i64: 1, 2, 128>}]} {
    %c0 = arith.constant 0 : index
    %c0_0 = arith.constant 0 : index
    %c0_1 = arith.constant 0 : index
    %0 = vector.load %arg1[%c0, %c0_0, %c0_1] : memref<1x2x32xf32, #tpu.memory_space<vmem>>, vector<1x2x32xf32>
    %1 = vector.shape_cast %0 : vector<1x2x32xf32> to vector<2x32xf32>
    %c0_2 = arith.constant 0 : index
    %c0_3 = arith.constant 0 : index
    %2 = vector.load %arg2[%c0_2, %c0_3] : memref<32x128xf32, #tpu.memory_space<vmem>>, vector<32x128xf32>
    %cst = arith.constant dense<0.000000e+00> : vector<2x128xf32>
    %3 = tpu.matmul %1, %2, %cst {dimension_numbers = #tpu.dot_dimension_numbers<[1], [0], [0], [1], [0, 0, 1, 1], [], []>} : vector<2x32xf32>, vector<32x128xf32>, vector<2x128xf32> -> vector<2x128xf32>
    %c0_4 = arith.constant 0 : index
    %c0_5 = arith.constant 0 : index
    %4 = vector.load %arg3[%c0_4, %c0_5] : memref<1x128xf32, #tpu.memory_space<vmem>>, vector<1x128xf32>
    %5 = vector.broadcast %4 : vector<1x128xf32> to vector<2x128xf32>
    %6 = arith.addf %3, %5 : vector<2x128xf32>
    %c0_6 = arith.constant 0 : index
    %c0_7 = arith.constant 0 : index
    %c0_8 = arith.constant 0 : index
    %7 = vector.load %arg4[%c0_6, %c0_7, %c0_8] : memref<1x2x128xf32, #tpu.memory_space<vmem>>, vector<1x2x128xf32>
    %8 = vector.shape_cast %7 : vector<1x2x128xf32> to vector<2x128xf32>
    %9 = vector.shape_cast %6 : vector<2x128xf32> to vector<1x2x128xf32>
    tpu.vector_store %arg4[%c0_6, %c0_7, %c0_8], %9 {strides = array<i32>} : memref<1x2x128xf32, #tpu.memory_space<vmem>>, vector<1x2x128xf32>,
    return
  }
  func.func @transform_0(%arg0: i32) -> (i32, i32, i32) {
    %c0_i32 = arith.constant 0 : i32
    %c0_i32_0 = arith.constant 0 : i32
    %c0_i32_1 = arith.constant 0 : i32
    return %arg0, %c0_i32, %c0_i32_0 : i32, i32, i32
  }
  func.func @transform_1(%arg0: i32) -> (i32, i32) {
    %c0_i32 = arith.constant 0 : i32
    %c0_i32_0 = arith.constant 0 : i32
    %c0_i32_1 = arith.constant 0 : i32
    return %c0_i32, %c0_i32_0 : i32, i32
  }
  func.func @transform_2(%arg0: i32) -> (i32, i32) {
    %c0_i32 = arith.constant 0 : i32
    %c0_i32_0 = arith.constant 0 : i32
    %c0_i32_1 = arith.constant 0 : i32
    return %c0_i32, %c0_i32_0 : i32, i32
  }
  func.func @transform_3(%arg0: i32) -> (i32, i32, i32) {
    %c0_i32 = arith.constant 0 : i32
    %c0_i32_0 = arith.constant 0 : i32
    %c0_i32_1 = arith.constant 0 : i32
    return %arg0, %c0_i32, %c0_i32_0 : i32, i32, i32
  }
}

</mosaic_0001>

<llo_original>
// kernel: tpu_custom_call.1
$region0: #{tpu_custom_call.1}
  #allocation0 [shape = 'u32[]', space=smem, size = 0x4, offset = 0x4, fixed_abs, tag = 'smem constant byte address 0x4 - core index']
  #allocation1 [shape = 'u32[72,128]{1,0:T(1,128)}', space=vmem, size = 0x9000, scoped, tag = 'internal scratch']
  %s0 = inlined_call_operand.hbm [shape: f32[8,2,32], index: 0, kind: input, shape index: {}]
  %s1 = inlined_call_operand.hbm [shape: f32[32,128], index: 1, kind: input, shape index: {}]
  %s2 = inlined_call_operand.vmem [shape: f32[1,128], index: 2, kind: input, shape index: {}]
  %s3 = inlined_call_operand.hbm [shape: f32[8,2,128], index: 3, kind: output, shape index: {}]
  %s4 = sld [smem:[#allocation0]]
  $region53: #{tpu_custom_call.1} parent=0
    _
  %s6 = ssub.s32 1, %s4
  %s7 = scalar_select 0, %s6, %s4
  $region1: #{tpu_custom_call.1} parent=0
    #allocation2 [shape = 'u8[2048]{0}', space=vmem, size = 0x800, scoped, tag = 'input window, operand 0']
    #allocation3 [shape = 's32[2]{0}', space=sflag, size = 0x8, scoped, tag = 'scoped memory for tpu_custom_call.1']
    #allocation4 [shape = 's32[2]{0}', space=sflag, size = 0x8, scoped, tag = 'scoped memory for tpu_custom_call.1']
    #allocation5 [shape = 'u8[16384]{0}', space=vmem, size = 0x4000, scoped, tag = 'input window, operand 1, single buffered']
    #allocation6 [shape = 's32[1]{0}', space=sflag, size = 0x4, scoped, tag = 'scoped memory for tpu_custom_call.1']
    #allocation7 [shape = 'u8[2048]{0}', space=vmem, size = 0x800, scoped, tag = 'output window, operand 0']
    %8 = vsyncpa [#allocation3], 0
    %s9 = scalar_lea.sflag [#allocation3], 1
    %10 = vsyncpa %s9, 0
    %11 = vsyncpa [#allocation6], 0
    %12 = vsyncpa [#allocation4], 0
    %s13 = scalar_lea.sflag [#allocation4], 1
    %14 = vsyncpa %s13, 0
    loop: start=0, step=1, limit=10
    $region2: #{tpu_custom_call.1} parent=1 // loop_pre_header
      _
    $region3: #{tpu_custom_call.1} parent=1 // loop_header
      %s16 = sphi 0, %s20
      %p17 = scmp.ge.s32.totalorder %s16, 10
      %s26 = sphi 0, %s28
      %s29 = sphi 0, %s26
      %s30 = sphi 0, %s29
      %s46 = sphi 0, %s30
      %s50 = sphi 0, %s50
      %s52 = sphi 0, %s50
      %s53 = sphi 0, %s52
      %s67 = sphi 0, %s53
      %s71 = sphi 0, %s71
      %s73 = sphi 0, %s71
      %s74 = sphi 0, %s73
      %s88 = sphi 0, %s74
      %s94 = sphi 0, %s96
      %s97 = sphi 0, %s94
      %s98 = sphi 0, %s97
      %s114 = sphi 0, %s98
    $region4: #{tpu_custom_call.1} parent=1 // loop_header_branch
      %19 = sbr.rel (%p17) target = $region8
    $region5: #{tpu_custom_call.1} parent=1 // loop_body
      %s21 = ssub.s32 %s16, 1
      %s22 = ssub.s32 %s16, 2
      %s23 = sadd.s32 %s16, 1
      %s24 = ssub.s32 %s16, %s23
      %p25 = scmp.eq.s32.totalorder %s24, 0
      %s27 = sadd.s32 %s26, 1
      %s28 = scalar_select %p25, %s26, %s27
      %p31 = pneg %p25
      %p32 = scmp.eq.s32.totalorder %s16, 7
      %p33 = por %p31, %p32
      %p34 = scmp.ne.s32.totalorder %s26, %s29
      %p35 = scmp.eq.s32.totalorder %s16, 0
      %p36 = por %p34, %p35
      %p37 = scmp.ne.s32.totalorder %s26, %s29
      %p38 = scmp.eq.s32.totalorder %s21, 7
      %p39 = por %p37, %p38
      %p40 = scmp.ne.s32.totalorder %s29, %s30
      %p41 = scmp.eq.s32.totalorder %s21, 0
      %p42 = por %p40, %p41
      %p43 = scmp.ne.s32.totalorder %s29, %s30
      %p44 = scmp.eq.s32.totalorder %s22, 7
      %p45 = por %p43, %p44
      %p47 = scmp.ne.s32.totalorder %s30, %s46
      %p48 = scmp.eq.s32.totalorder %s22, 0
      %p49 = por %p47, %p48
      %s51 = sadd.s32 %s50, 1
      %p54 = scmp.eq.s32.totalorder %s16, 7
      %p55 = scmp.ne.s32.totalorder %s50, %s52
      %p56 = scmp.eq.s32.totalorder %s16, 0
      %p57 = por %p55, %p56
      %p58 = scmp.ne.s32.totalorder %s50, %s52
      %p59 = scmp.eq.s32.totalorder %s21, 7
      %p60 = por %p58, %p59
      %p61 = scmp.ne.s32.totalorder %s52, %s53
      %p62 = scmp.eq.s32.totalorder %s21, 0
      %p63 = por %p61, %p62
      %p64 = scmp.ne.s32.totalorder %s52, %s53
      %p65 = scmp.eq.s32.totalorder %s22, 7
      %p66 = por %p64, %p65
      %p68 = scmp.ne.s32.totalorder %s53, %s67
      %p69 = scmp.eq.s32.totalorder %s22, 0
      %p70 = por %p68, %p69
      %s72 = sadd.s32 %s71, 1
      %p75 = scmp.eq.s32.totalorder %s16, 7
      %p76 = scmp.ne.s32.totalorder %s71, %s73
      %p77 = scmp.eq.s32.totalorder %s16, 0
      %p78 = por %p76, %p77
      %p79 = scmp.ne.s32.totalorder %s71, %s73
      %p80 = scmp.eq.s32.totalorder %s21, 7
      %p81 = por %p79, %p80
      %p82 = scmp.ne.s32.totalorder %s73, %s74
      %p83 = scmp.eq.s32.totalorder %s21, 0
      %p84 = por %p82, %p83
      %p85 = scmp.ne.s32.totalorder %s73, %s74
      %p86 = scmp.eq.s32.totalorder %s22, 7
      %p87 = por %p85, %p86
      %p89 = scmp.ne.s32.totalorder %s74, %s88
      %p90 = scmp.eq.s32.totalorder %s22, 0
      %p91 = por %p89, %p90
      %s92 = ssub.s32 %s16, %s23
      %p93 = scmp.eq.s32.totalorder %s92, 0
      %s95 = sadd.s32 %s94, 1
      %s96 = scalar_select %p93, %s94, %s95
      %p99 = pneg %p93
      %p100 = scmp.eq.s32.totalorder %s16, 7
      %p101 = por %p99, %p100
      %p102 = scmp.ne.s32.totalorder %s94, %s97
      %p103 = scmp.eq.s32.totalorder %s16, 0
      %p104 = por %p102, %p103
      %p105 = scmp.ne.s32.totalorder %s94, %s97
      %p106 = scmp.eq.s32.totalorder %s21, 7
      %p107 = por %p105, %p106
      %p108 = scmp.ne.s32.totalorder %s97, %s98
      %p109 = scmp.eq.s32.totalorder %s21, 0
      %p110 = por %p108, %p109
      %p111 = scmp.ne.s32.totalorder %s97, %s98
      %p112 = scmp.eq.s32.totalorder %s22, 7
      %p113 = por %p111, %p112
      %p115 = scmp.ne.s32.totalorder %s98, %s114
      %p116 = scmp.eq.s32.totalorder %s22, 0
      %p117 = por %p115, %p116
      %p118 = scmp.le.s32.totalorder 1, %s16
      %p119 = scmp.lt.s32.totalorder %s16, 9
      %p120 = pnand %p118, %p119
      %p121 = pneg %p120
      // Predicated region
      $region9: #{tpu_custom_call.1} parent=5 // pred_check
        _
      $region10: #{tpu_custom_call.1} parent=5 // pred_check_branch
        %123 = sbr.rel (%p120) target = $region12
      $region11: #{tpu_custom_call.1} parent=5 // pred_region
        %s124 = ssub.s32 %s16, 1
        // Predicated region
        $region13: #{tpu_custom_call.1} parent=11 // pred_check
          %p125 = pneg %p63
        $region14: #{tpu_custom_call.1} parent=11 // pred_check_branch
          %127 = sbr.rel (%p125) target = $region16
        $region15: #{tpu_custom_call.1} parent=11 // pred_region
          %129 = vsyncadd [#allocation6], 0
          %s130 = sshll.u32 %s1, 4
          %s131 = int_to_ptr.hbm [resolvable:$true] %s130
          %s132 = sshll.u32 [#allocation5], 4
          %s133 = int_to_ptr.vmem [resolvable:$true] %s132
          %138 = dma.hbm_to_vmem [thread:$0]  %s131, 512, %s133, [#allocation6], 128, 128, 8
        $region16: #{tpu_custom_call.1} parent=11 // pred_fallthru
          _
        // Predicated region
        $region17: #{tpu_custom_call.1} parent=11 // pred_check
          %p139 = pneg %p84
        $region18: #{tpu_custom_call.1} parent=11 // pred_check_branch
          %141 = sbr.rel (%p139) target = $region20
        $region19: #{tpu_custom_call.1} parent=11 // pred_region
          _
        $region20: #{tpu_custom_call.1} parent=11 // pred_fallthru
          _
      $region12: #{tpu_custom_call.1} parent=5 // pred_fallthru
        _
      %p142 = scmp.lt.s32.totalorder %s16, 8
      // Predicated region
      $region21: #{tpu_custom_call.1} parent=5 // pred_check
        %p143 = pneg %p142
      $region22: #{tpu_custom_call.1} parent=5 // pred_check_branch
        %145 = sbr.rel (%p143) target = $region24
      $region23: #{tpu_custom_call.1} parent=5 // pred_region
        // Predicated region
        $region25: #{tpu_custom_call.1} parent=23 // pred_check
          %p146 = pneg %p36
        $region26: #{tpu_custom_call.1} parent=23 // pred_check_branch
          %148 = sbr.rel (%p146) target = $region28
        $region27: #{tpu_custom_call.1} parent=23 // pred_region
          %s149 = sand.u32 %s26, 1
          %s150 = scalar_lea.sflag [#allocation3], %s149
          %s151 = sand.u32 %s26, 1
          %s152 = smul.addr %s151, 2
          %s153 = scalar_lea.vmem [#allocation2], %s152
          %155 = vsyncadd %s150, 0
          %s156 = smul.addr %s16, 2
          %s157 = scalar_lea.hbm %s0, %s156
          %s159 = sshll.u32 %s157, 4
          %s160 = int_to_ptr.hbm [resolvable:$true] %s159
          %s161 = sshll.u32 %s153, 4
          %s162 = int_to_ptr.vmem [resolvable:$true] %s161
          %164 = dma.hbm_to_vmem [thread:$0]  %s160, 32, %s162, %s150
        $region28: #{tpu_custom_call.1} parent=23 // pred_fallthru
          _
      $region24: #{tpu_custom_call.1} parent=5 // pred_fallthru
        _
      %p165 = scmp.le.s32.totalorder 1, %s16
      %p166 = scmp.lt.s32.totalorder %s16, 9
      %p167 = pnand %p165, %p166
      %p168 = pneg %p167
      // Predicated region
      $region29: #{tpu_custom_call.1} parent=5 // pred_check
        _
      $region30: #{tpu_custom_call.1} parent=5 // pred_check_branch
        %170 = sbr.rel (%p167) target = $region32
      $region31: #{tpu_custom_call.1} parent=5 // pred_region
        %s171 = ssub.s32 %s16, 1
        %s172 = sand.u32 %s29, 1
        %s173 = scalar_lea.sflag [#allocation3], %s172
        %s174 = sand.u32 %s29, 1
        %s175 = smul.addr %s174, 2
        %s176 = scalar_lea.vmem [#allocation2], %s175
        // Predicated region
        $region33: #{tpu_custom_call.1} parent=31 // pred_check
          %p177 = pneg %p42
        $region34: #{tpu_custom_call.1} parent=31 // pred_check_branch
          %179 = sbr.rel (%p177) target = $region36
        $region35: #{tpu_custom_call.1} parent=31 // pred_region
          %181 = dma.done %s173, 32
        $region36: #{tpu_custom_call.1} parent=31 // pred_fallthru
          _
        // Predicated region
        $region37: #{tpu_custom_call.1} parent=31 // pred_check
          %p182 = pneg %p63
        $region38: #{tpu_custom_call.1} parent=31 // pred_check_branch
          %184 = sbr.rel (%p182) target = $region40
        $region39: #{tpu_custom_call.1} parent=31 // pred_region
          %186 = dma.done [#allocation6], 512
        $region40: #{tpu_custom_call.1} parent=31 // pred_fallthru
          _
        %s187 = sand.u32 %s29, 1
        %s188 = scalar_lea.sflag [#allocation3], %s187
        %s189 = sand.u32 %s29, 1
        %s190 = smul.addr %s189, 2
        %s191 = scalar_lea.vmem [#allocation2], %s190
        %p192 = pneg %p42
        %p193 = pneg %p39
        %p194 = pneg %p63
        %p195 = pneg %p60
        %p196 = pneg %p84
        %p197 = pneg %p81
        %p198 = pneg %p110
        %p199 = pneg %p107
        %s200 = sand.u32 %s97, 1
        %s201 = scalar_lea.sflag [#allocation4], %s200
        %s202 = sand.u32 %s97, 1
        %s203 = smul.addr %s202, 2
        %s204 = scalar_lea.vmem [#allocation7], %s203
        %v205 = vld [vmem:[%s176] sm:$0x3]
        %v206 = vld [vmem:[#allocation5] sm:$0xff]
        %v207 = vld [vmem:[#allocation5 + $0x8] sm:$0xff]
        %v208 = vld [vmem:[#allocation5 + $0x10] sm:$0xff]
        %v209 = vld [vmem:[#allocation5 + $0x18] sm:$0xff]
        %v210 = vld [vmem:[%s2] sm:$0x1]
        %v212 = vperm.slane %v210, 0
        %vm214 = vcmask 261120
        %v216 = vsel %vm214, %v205, 0
        %218 = vmatpush.msra.mxu0 0.0
        %219 = vmatpush.msra.mxu0 0.0
        %220 = vmatpush.msra.mxu0 0.0
        %221 = vmatpush.msra.mxu0 0.0
        %222 = vmatpush.msra.mxu0 0.0
        %223 = vmatpush.msra.mxu0 0.0
        %224 = vmatpush.msra.mxu0 0.0
        %225 = vmatpush.msra.mxu0 0.0
        %226 = vmatpush.msra.mxu0 0.0
        %227 = vmatpush.msra.mxu0 0.0
        %228 = vmatpush.msra.mxu0 0.0
        %229 = vmatpush.msra.mxu0 0.0
        %230 = vmatpush.msra.mxu0 %v209
        %231 = vmatpush.msra.mxu0 %v208
        %232 = vmatpush.msra.mxu0 %v207
        %233 = vmatpush.msra.mxu0 %v206
        %234 = vmatmul.f32.gmra.mxu0 %v216
        %v235 = vpop.f32.mrf.mxu0
        %v236 = vadd.f32 %v212, %v235
        %237 = vdwg.mxu0
        %238 = vst [vmem:[%s204] sm:$0x3] %v236
        %s239 = sand.u32 %s97, 1
        %s240 = scalar_lea.sflag [#allocation4], %s239
        %s241 = sand.u32 %s97, 1
        %s242 = smul.addr %s241, 2
        %s243 = scalar_lea.vmem [#allocation7], %s242
        // Predicated region
        $region41: #{tpu_custom_call.1} parent=31 // pred_check
          %p244 = pneg %p107
        $region42: #{tpu_custom_call.1} parent=31 // pred_check_branch
          %246 = sbr.rel (%p244) target = $region44
        $region43: #{tpu_custom_call.1} parent=31 // pred_region
          %248 = vsyncadd %s240, 0
          %s249 = smul.addr %s21, 2
          %s250 = scalar_lea.hbm %s3, %s249
          %s252 = sshll.u32 %s243, 4
          %s253 = int_to_ptr.vmem [resolvable:$true] %s252
          %s254 = sshll.u32 %s250, 4
          %s255 = int_to_ptr.hbm [resolvable:$true] %s254
          %257 = dma.vmem_to_hbm [thread:$0]  %s253, 32, %s255, %s240
        $region44: #{tpu_custom_call.1} parent=31 // pred_fallthru
          _
      $region32: #{tpu_custom_call.1} parent=5 // pred_fallthru
        _
      %p258 = scmp.le.s32.totalorder 2, %s16
      // Predicated region
      $region45: #{tpu_custom_call.1} parent=5 // pred_check
        %p259 = pneg %p258
      $region46: #{tpu_custom_call.1} parent=5 // pred_check_branch
        %261 = sbr.rel (%p259) target = $region48
      $region47: #{tpu_custom_call.1} parent=5 // pred_region
        %s262 = ssub.s32 %s16, 2
        // Predicated region
        $region49: #{tpu_custom_call.1} parent=47 // pred_check
          %p263 = pneg %p113
        $region50: #{tpu_custom_call.1} parent=47 // pred_check_branch
          %265 = sbr.rel (%p263) target = $region52
        $region51: #{tpu_custom_call.1} parent=47 // pred_region
          %s266 = sand.u32 %s98, 1
          %s267 = scalar_lea.sflag [#allocation4], %s266
          %s268 = sand.u32 %s98, 1
          %s269 = smul.addr %s268, 2
          %s270 = scalar_lea.vmem [#allocation7], %s269
          %272 = dma.done %s267, 32
        $region52: #{tpu_custom_call.1} parent=47 // pred_fallthru
          _
      $region48: #{tpu_custom_call.1} parent=5 // pred_fallthru
        _
    $region6: #{tpu_custom_call.1} parent=1 // loop_footer
      %s20 = sadd.s32 1, %s16
    $region7: #{tpu_custom_call.1} parent=1 // loop_footer_branch
      %15 = sbr.rel target = $region3
    $region8: #{tpu_custom_call.1} parent=1 // loop_exit
      _
    %273 = vsyncpa [#allocation3], 1
    %s274 = scalar_lea.sflag [#allocation3], 1
    %275 = vsyncpa %s274, 1
    %276 = vsyncpa [#allocation6], 1
    %277 = vsyncpa [#allocation4], 1
    %s278 = scalar_lea.sflag [#allocation4], 1
    %279 = vsyncpa %s278, 1

</llo_original>
